<compile_context>
chip_gen: v7x
topology: tpu7x:2x2x1
jax: 0.10.0
libtpu: 0.0.40
codegen_flags: <defaults>
</compile_context>

<pallas_src>
import jax
import jax.numpy as jnp
from jax import lax
from jax.experimental import pallas as pl
from jax.experimental.pallas import tpu as pltpu
import numpy as np


def _self_attention_kernel(xq_ref, xkv_ref,
                           wq_ref, wk_ref, wv_ref, wp_ref,
                           bq_ref, bk_ref, bv_ref, bp_ref,
                           o_ref,
                           q_scr, acc_scr, m_scr, l_scr):
    """One (batch, q-tile, kv-tile) grid step of flash-style spatial self-attention.

    xq_ref : (1, C, tq)  input rows for this q tile (channels on sublanes, HW on lanes)
    xkv_ref: (1, C, tk)  input rows for this kv tile
    w*_ref : (C, C)      1x1-conv weights (wq/bq already scaled by 1/sqrt(C) on the host)
    b*_ref : (C, 1)      1x1-conv biases
    o_ref  : (1, C, tq)  output tile (resident across the kv grid axis)
    scratch: q (C,tq) f32, acc (C,tq) f32, m (1,tq) f32, l (1,tq) f32
    """
    ki = pl.program_id(2)

    @pl.when(ki == 0)
    def _init():
        xq = xq_ref[0]                                                         # (C, tq)
        q_scr[...] = (jnp.dot(wq_ref[...], xq,
                              preferred_element_type=jnp.float32) + bq_ref[...])
        acc_scr[...] = jnp.zeros_like(acc_scr)
        m_scr[...] = jnp.full_like(m_scr, -jnp.inf)
        l_scr[...] = jnp.zeros_like(l_scr)

    # K / V for this kv tile (1x1 conv == channel matmul). Recomputed per q-tile; the extra
    # C*C*tk flops are negligible next to the tq*tk*C attention work.
    xkv = xkv_ref[0]                                                           # (C, tk)
    k = jnp.dot(wk_ref[...], xkv, preferred_element_type=jnp.float32) + bk_ref[...]
    v = jnp.dot(wv_ref[...], xkv, preferred_element_type=jnp.float32) + bv_ref[...]

    # Scores s[j, i] = <k_j, q_i>  (scale already folded into q). Contract the channel axes
    # directly (no transposed copy); bf16 MXU operands, f32 accumulation.
    s = lax.dot_general(k.astype(jnp.bfloat16),
                        q_scr[...].astype(jnp.bfloat16),
                        dimension_numbers=(((0,), (0,)), ((), ())),
                        preferred_element_type=jnp.float32)                    # (tk, tq)

    # Online softmax over the kv axis (f32 stats; probabilities kept unnormalized).
    m_prev = m_scr[...]                                                        # (1, tq)
    m_new = jnp.maximum(m_prev, jnp.max(s, axis=0, keepdims=True))             # (1, tq)
    alpha = jnp.exp(m_prev - m_new)                                            # (1, tq)
    p = jnp.exp(s - m_new)                                                     # (tk, tq)
    l_scr[...] = alpha * l_scr[...] + jnp.sum(p, axis=0, keepdims=True)
    acc_scr[...] = alpha * acc_scr[...] + jnp.dot(
        v.astype(jnp.bfloat16), p.astype(jnp.bfloat16),
        preferred_element_type=jnp.float32)                                    # (C, tq)
    m_scr[...] = m_new

    @pl.when(ki == pl.num_programs(2) - 1)
    def _finalize():
        inv_l = pl.reciprocal(l_scr[...], approx=True)                         # (1, tq), EUP
        out = acc_scr[...] * inv_l                                             # (C, tq)
        y = jnp.dot(wp_ref[...], out,
                    preferred_element_type=jnp.float32) + bp_ref[...]          # proj 1x1 conv
        o_ref[0] = y.astype(o_ref.dtype)


def self_attention_pallas(x_nchw, w_qkv, b_qkv, w_proj, b_proj, *, tq=None, tk=None):
    """Forward of the PyTorch SelfAttention module.

    x_nchw: (B, C, H, W); w_qkv: (3C, C); b_qkv: (3C,); w_proj: (C, C); b_proj: (C,).
    """
    B, C, H, W = x_nchw.shape
    HW = H * W

    # Tile sizes: multiples of 128 that divide HW (lane-aligned); fall back to the full spatial
    # extent for tiny/odd sizes (full-dim blocks satisfy the (8,128) rule).
    def _auto(t):
        return (128 if HW % 128 == 0 else HW) if t is None else t
    tq = _auto(tq)
    tk = _auto(tk)
    assert HW % tq == 0 and HW % tk == 0, "tile sizes must divide H*W"
    n_q, n_kv = HW // tq, HW // tk

    # NCHW -> (B, C, HW): a pure reshape -- no extra HBM transpose pass.
    x = x_nchw.reshape(B, C, HW).astype(jnp.float32)

    # Split the fused qkv conv weights; fold the 1/sqrt(C) attention scale into q's weight+bias.
    scale = 1.0 / (float(C) ** 0.5)
    wq = (w_qkv[0 * C:1 * C, :] * scale).astype(jnp.float32)
    wk = w_qkv[1 * C:2 * C, :].astype(jnp.float32)
    wv = w_qkv[2 * C:3 * C, :].astype(jnp.float32)
    wp = w_proj.astype(jnp.float32)
    bq = (b_qkv[0 * C:1 * C] * scale).astype(jnp.float32).reshape(C, 1)
    bk = b_qkv[1 * C:2 * C].astype(jnp.float32).reshape(C, 1)
    bv = b_qkv[2 * C:3 * C].astype(jnp.float32).reshape(C, 1)
    bp = b_proj.astype(jnp.float32).reshape(C, 1)

    weight_spec = pl.BlockSpec((C, C), lambda b, qi, ki: (0, 0))
    bias_spec = pl.BlockSpec((C, 1), lambda b, qi, ki: (0, 0))

    # Scoped-VMEM budget derived from the chosen tiles (double-buffered blocks + scratch +
    # in-kernel temporaries), with headroom, capped below v7x's 64 MiB physical VMEM.
    f32b = 4
    blocks = f32b * (C * tq + C * tk + 4 * C * C + 4 * C)    # per-step input blocks
    out_blk = f32b * C * tq
    scratch = f32b * (2 * C * tq + 2 * tq)
    temps = f32b * (3 * tk * tq + 4 * C * max(tq, tk))       # score/prob tiles, k/v, bf16 casts
    vmem_limit = int(min(max(4 * (2 * blocks + 2 * out_blk + scratch + temps),
                             8 * 1024 * 1024),
                         48 * 1024 * 1024))

    out = pl.pallas_call(
        _self_attention_kernel,
        out_shape=jax.ShapeDtypeStruct((B, C, HW), jnp.float32),
        grid_spec=pltpu.PrefetchScalarGridSpec(
            num_scalar_prefetch=0,
            grid=(B, n_q, n_kv),                              # kv (reduction) axis last
            in_specs=[
                pl.BlockSpec((1, C, tq), lambda b, qi, ki: (b, 0, qi)),   # x rows for q tile
                pl.BlockSpec((1, C, tk), lambda b, qi, ki: (b, 0, ki)),   # x rows for kv tile
                weight_spec, weight_spec, weight_spec, weight_spec,
                bias_spec, bias_spec, bias_spec, bias_spec,
            ],
            out_specs=pl.BlockSpec((1, C, tq), lambda b, qi, ki: (b, 0, qi)),
            scratch_shapes=[
                pltpu.VMEM((C, tq), jnp.float32),   # q tile (pre-scaled)
                pltpu.VMEM((C, tq), jnp.float32),   # output accumulator
                pltpu.VMEM((1, tq), jnp.float32),   # running row max
                pltpu.VMEM((1, tq), jnp.float32),   # running row sum
            ],
        ),
        compiler_params=pltpu.CompilerParams(
            dimension_semantics=("parallel", "parallel", "arbitrary"),
            vmem_limit_bytes=vmem_limit,
        ),
    )(x, x, wq, wk, wv, wp, bq, bk, bv, bp)

    return out.reshape(B, C, H, W)


def self_attention_ref(x_nchw, w_qkv, b_qkv, w_proj, b_proj):
    """Plain-JAX f32 reference matching the PyTorch forward exactly."""
    B, C, H, W = x_nchw.shape
    HW = H * W
    qkv = jnp.einsum('bchw,oc->bohw', x_nchw, w_qkv) + b_qkv[None, :, None, None]
    qkv = qkv.reshape(B, 3, C, HW)
    q, k, v = qkv[:, 0], qkv[:, 1], qkv[:, 2]                     # each (B, C, HW)
    attn = jnp.einsum('bci,bcj->bij', q, k) / (C ** 0.5)          # (B, HW, HW)
    attn = jax.nn.softmax(attn, axis=-1)
    out = jnp.einsum('bij,bcj->bci', attn, v).reshape(B, C, H, W)
    return jnp.einsum('bchw,oc->bohw', out, w_proj) + b_proj[None, :, None, None]


if __name__ == "__main__":
    B, C, H, W = 2, 4, 16, 16
    key = jax.random.PRNGKey(0)
    kx, kw1, kb1, kw2, kb2 = jax.random.split(key, 5)

    x = jax.random.normal(kx, (B, C, H, W), dtype=jnp.float32)
    # Synthetic parameters; shapes follow nn.Conv2d(dim, dim*3, 1) / nn.Conv2d(dim, dim, 1).
    w_qkv = jax.random.normal(kw1, (3 * C, C), dtype=jnp.float32) * 0.1
    b_qkv = jax.random.normal(kb1, (3 * C,), dtype=jnp.float32) * 0.1
    w_proj = jax.random.normal(kw2, (C, C), dtype=jnp.float32) * 0.1
    b_proj = jax.random.normal(kb2, (C,), dtype=jnp.float32) * 0.1

    y = jax.block_until_ready(self_attention_pallas(x, w_qkv, b_qkv, w_proj, b_proj))
    y_ref = jax.block_until_ready(self_attention_ref(x, w_qkv, b_qkv, w_proj, b_proj))

    # bf16 MXU operands + approx reciprocal -> compare against the f32 reference with a
    # bf16-appropriate tolerance.
    np.testing.assert_allclose(np.asarray(y), np.asarray(y_ref), rtol=2e-2, atol=2e-2)

    print("KERNEL_OK")
</pallas_src>

<mosaic_0001>
module attributes {stable_mosaic.version = 11 : i64} {
  func.func @_self_attention_kernel(%arg0: i32, %arg1: i32, %arg2: i32, %arg3: memref<1x4x128xf32, #tpu.memory_space<vmem>>, %arg4: memref<1x4x128xf32, #tpu.memory_space<vmem>>, %arg5: memref<4x4xf32, #tpu.memory_space<vmem>>, %arg6: memref<4x4xf32, #tpu.memory_space<vmem>>, %arg7: memref<4x4xf32, #tpu.memory_space<vmem>>, %arg8: memref<4x4xf32, #tpu.memory_space<vmem>>, %arg9: memref<4x1xf32, #tpu.memory_space<vmem>>, %arg10: memref<4x1xf32, #tpu.memory_space<vmem>>, %arg11: memref<4x1xf32, #tpu.memory_space<vmem>>, %arg12: memref<4x1xf32, #tpu.memory_space<vmem>>, %arg13: memref<1x4x128xf32, #tpu.memory_space<vmem>>, %arg14: memref<4x128xf32, #tpu.memory_space<vmem>>, %arg15: memref<4x128xf32, #tpu.memory_space<vmem>>, %arg16: memref<1x128xf32, #tpu.memory_space<vmem>>, %arg17: memref<1x128xf32, #tpu.memory_space<vmem>>) attributes {dimension_semantics = [#tpu.dimension_semantics<parallel>, #tpu.dimension_semantics<parallel>, #tpu.dimension_semantics<arbitrary>], iteration_bounds = array<i64: 2, 2, 2>, scalar_prefetch = 0 : i64, scratch_operands = 4 : i64, tpu.core_type = #tpu.core_type<tc>, window_params = [{transform_indices = @transform_0, window_bounds = array<i64: 1, 4, 128>}, {transform_indices = @transform_1, window_bounds = array<i64: 1, 4, 128>}, {pipeline_mode = #tpu.pipeline_mode<synchronous>, transform_indices = @transform_2, window_bounds = array<i64: 4, 4>}, {pipeline_mode = #tpu.pipeline_mode<synchronous>, transform_indices = @transform_3, window_bounds = array<i64: 4, 4>}, {pipeline_mode = #tpu.pipeline_mode<synchronous>, transform_indices = @transform_4, window_bounds = array<i64: 4, 4>}, {pipeline_mode = #tpu.pipeline_mode<synchronous>, transform_indices = @transform_5, window_bounds = array<i64: 4, 4>}, {pipeline_mode = #tpu.pipeline_mode<synchronous>, transform_indices = @transform_6, window_bounds = array<i64: 4, 1>}, {pipeline_mode = #tpu.pipeline_mode<synchronous>, transform_indices = @transform_7, window_bounds = array<i64: 4, 1>}, {pipeline_mode = #tpu.pipeline_mode<synchronous>, transform_indices = @transform_8, window_bounds = array<i64: 4, 1>}, {pipeline_mode = #tpu.pipeline_mode<synchronous>, transform_indices = @transform_9, window_bounds = array<i64: 4, 1>}, {transform_indices = @transform_10, window_bounds = array<i64: 1, 4, 128>}]} {
    %c0_i32 = arith.constant 0 : i32
    %0 = arith.cmpi eq, %arg2, %c0_i32 : i32
    %1 = arith.extui %0 : i1 to i32
    %c0_i32_0 = arith.constant 0 : i32
    %2 = arith.cmpi ne, %1, %c0_i32_0 : i32
    scf.if %2 {
      %c0_31 = arith.constant 0 : index
      %c0_32 = arith.constant 0 : index
      %c0_33 = arith.constant 0 : index
      %46 = vector.load %arg3[%c0_31, %c0_32, %c0_33] : memref<1x4x128xf32, #tpu.memory_space<vmem>>, vector<1x4x128xf32>
      %47 = vector.shape_cast %46 : vector<1x4x128xf32> to vector<4x128xf32>
      %c0_34 = arith.constant 0 : index
      %c0_35 = arith.constant 0 : index
      %48 = vector.load %arg5[%c0_34, %c0_35] : memref<4x4xf32, #tpu.memory_space<vmem>>, vector<4x4xf32>
      %cst_36 = arith.constant dense<0.000000e+00> : vector<4x128xf32>
      %49 = tpu.matmul %48, %47, %cst_36 {dimension_numbers = #tpu.dot_dimension_numbers<[1], [0], [0], [1], [0, 0, 1, 1], [], []>} : vector<4x4xf32>, vector<4x128xf32>, vector<4x128xf32> -> vector<4x128xf32>
      %c0_37 = arith.constant 0 : index
      %c0_38 = arith.constant 0 : index
      %50 = vector.load %arg9[%c0_37, %c0_38] : memref<4x1xf32, #tpu.memory_space<vmem>>, vector<4x1xf32>
      %51 = vector.broadcast %50 : vector<4x1xf32> to vector<4x128xf32>
      %52 = arith.addf %49, %51 : vector<4x128xf32>
      %c0_39 = arith.constant 0 : index
      %c0_40 = arith.constant 0 : index
      %53 = vector.load %arg14[%c0_39, %c0_40] : memref<4x128xf32, #tpu.memory_space<vmem>>, vector<4x128xf32>
      tpu.vector_store %arg14[%c0_39, %c0_40], %52 {strides = array<i32>} : memref<4x128xf32, #tpu.memory_space<vmem>>, vector<4x128xf32>,
      %cst_41 = arith.constant 0.000000e+00 : f32
      %54 = vector.broadcast %cst_41 : f32 to vector<4x128xf32>
      %c0_42 = arith.constant 0 : index
      %c0_43 = arith.constant 0 : index
      %55 = vector.load %arg15[%c0_42, %c0_43] : memref<4x128xf32, #tpu.memory_space<vmem>>, vector<4x128xf32>
      tpu.vector_store %arg15[%c0_42, %c0_43], %54 {strides = array<i32>} : memref<4x128xf32, #tpu.memory_space<vmem>>, vector<4x128xf32>,
      %cst_44 = arith.constant 0xFF800000 : f32
      %56 = vector.broadcast %cst_44 : f32 to vector<1x128xf32>
      %c0_45 = arith.constant 0 : index
      %c0_46 = arith.constant 0 : index
      %57 = vector.load %arg16[%c0_45, %c0_46] : memref<1x128xf32, #tpu.memory_space<vmem>>, vector<1x128xf32>
      tpu.vector_store %arg16[%c0_45, %c0_46], %56 {strides = array<i32>} : memref<1x128xf32, #tpu.memory_space<vmem>>, vector<1x128xf32>,
      %cst_47 = arith.constant 0.000000e+00 : f32
      %58 = vector.broadcast %cst_47 : f32 to vector<1x128xf32>
      %c0_48 = arith.constant 0 : index
      %c0_49 = arith.constant 0 : index
      %59 = vector.load %arg17[%c0_48, %c0_49] : memref<1x128xf32, #tpu.memory_space<vmem>>, vector<1x128xf32>
      tpu.vector_store %arg17[%c0_48, %c0_49], %58 {strides = array<i32>} : memref<1x128xf32, #tpu.memory_space<vmem>>, vector<1x128xf32>,
    } else {
    }
    %c0 = arith.constant 0 : index
    %c0_1 = arith.constant 0 : index
    %c0_2 = arith.constant 0 : index
    %3 = vector.load %arg4[%c0, %c0_1, %c0_2] : memref<1x4x128xf32, #tpu.memory_space<vmem>>, vector<1x4x128xf32>
    %4 = vector.shape_cast %3 : vector<1x4x128xf32> to vector<4x128xf32>
    %c0_3 = arith.constant 0 : index
    %c0_4 = arith.constant 0 : index
    %5 = vector.load %arg6[%c0_3, %c0_4] : memref<4x4xf32, #tpu.memory_space<vmem>>, vector<4x4xf32>
    %cst = arith.constant dense<0.000000e+00> : vector<4x128xf32>
    %6 = tpu.matmul %5, %4, %cst {dimension_numbers = #tpu.dot_dimension_numbers<[1], [0], [0], [1], [0, 0, 1, 1], [], []>} : vector<4x4xf32>, vector<4x128xf32>, vector<4x128xf32> -> vector<4x128xf32>
    %c0_5 = arith.constant 0 : index
    %c0_6 = arith.constant 0 : index
    %7 = vector.load %arg10[%c0_5, %c0_6] : memref<4x1xf32, #tpu.memory_space<vmem>>, vector<4x1xf32>
    %8 = vector.broadcast %7 : vector<4x1xf32> to vector<4x128xf32>
    %9 = arith.addf %6, %8 : vector<4x128xf32>
    %c0_7 = arith.constant 0 : index
    %c0_8 = arith.constant 0 : index
    %10 = vector.load %arg7[%c0_7, %c0_8] : memref<4x4xf32, #tpu.memory_space<vmem>>, vector<4x4xf32>
    %cst_9 = arith.constant dense<0.000000e+00> : vector<4x128xf32>
    %11 = tpu.matmul %10, %4, %cst_9 {dimension_numbers = #tpu.dot_dimension_numbers<[1], [0], [0], [1], [0, 0, 1, 1], [], []>} : vector<4x4xf32>, vector<4x128xf32>, vector<4x128xf32> -> vector<4x128xf32>
    %c0_10 = arith.constant 0 : index
    %c0_11 = arith.constant 0 : index
    %12 = vector.load %arg11[%c0_10, %c0_11] : memref<4x1xf32, #tpu.memory_space<vmem>>, vector<4x1xf32>
    %13 = vector.broadcast %12 : vector<4x1xf32> to vector<4x128xf32>
    %14 = arith.addf %11, %13 : vector<4x128xf32>
    %15 = arith.truncf %9 : vector<4x128xf32> to vector<4x128xbf16>
    %c0_12 = arith.constant 0 : index
    %c0_13 = arith.constant 0 : index
    %16 = vector.load %arg14[%c0_12, %c0_13] : memref<4x128xf32, #tpu.memory_space<vmem>>, vector<4x128xf32>
    %17 = arith.truncf %16 : vector<4x128xf32> to vector<4x128xbf16>
    %cst_14 = arith.constant dense<0.000000e+00> : vector<128x128xf32>
    %18 = tpu.matmul %15, %17, %cst_14 {dimension_numbers = #tpu.dot_dimension_numbers<[0], [0], [1], [1], [0, 1, 1, 1], [], []>} : vector<4x128xbf16>, vector<4x128xbf16>, vector<128x128xf32> -> vector<128x128xf32>
    %c0_15 = arith.constant 0 : index
    %c0_16 = arith.constant 0 : index
    %19 = vector.load %arg16[%c0_15, %c0_16] : memref<1x128xf32, #tpu.memory_space<vmem>>, vector<1x128xf32>
    %cst_17 = arith.constant dense<0xFF800000> : vector<128xf32>
    %20 = vector.multi_reduction <maximumf>, %18, %cst_17 [0] : vector<128x128xf32> to vector<128xf32>
    %21 = vector.shape_cast %20 : vector<128xf32> to vector<1x128xf32>
    %22 = arith.maximumf %19, %21 : vector<1x128xf32>
    %23 = arith.subf %19, %22 : vector<1x128xf32>
    %24 = math.exp %23 : vector<1x128xf32>
    %25 = vector.broadcast %22 : vector<1x128xf32> to vector<128x128xf32>
    %26 = arith.subf %18, %25 : vector<128x128xf32>
    %27 = math.exp %26 : vector<128x128xf32>
    %c0_18 = arith.constant 0 : index
    %c0_19 = arith.constant 0 : index
    %28 = vector.load %arg17[%c0_18, %c0_19] : memref<1x128xf32, #tpu.memory_space<vmem>>, vector<1x128xf32>
    %29 = arith.mulf %24, %28 : vector<1x128xf32>
    %cst_20 = arith.constant dense<0.000000e+00> : vector<128xf32>
    %30 = vector.multi_reduction <add>, %27, %cst_20 [0] : vector<128x128xf32> to vector<128xf32>
    %31 = vector.shape_cast %30 : vector<128xf32> to vector<1x128xf32>
    %32 = arith.addf %29, %31 : vector<1x128xf32>
    %c0_21 = arith.constant 0 : index
    %c0_22 = arith.constant 0 : index
    %33 = vector.load %arg17[%c0_21, %c0_22] : memref<1x128xf32, #tpu.memory_space<vmem>>, vector<1x128xf32>
    tpu.vector_store %arg17[%c0_21, %c0_22], %32 {strides = array<i32>} : memref<1x128xf32, #tpu.memory_space<vmem>>, vector<1x128xf32>,
    %c0_23 = arith.constant 0 : index
    %c0_24 = arith.constant 0 : index
    %34 = vector.load %arg15[%c0_23, %c0_24] : memref<4x128xf32, #tpu.memory_space<vmem>>, vector<4x128xf32>
    %35 = vector.broadcast %24 : vector<1x128xf32> to vector<4x128xf32>
    %36 = arith.mulf %35, %34 : vector<4x128xf32>
    %37 = arith.truncf %14 : vector<4x128xf32> to vector<4x128xbf16>
    %38 = arith.truncf %27 : vector<128x128xf32> to vector<128x128xbf16>
    %cst_25 = arith.constant dense<0.000000e+00> : vector<4x128xf32>
    %39 = tpu.matmul %37, %38, %cst_25 {dimension_numbers = #tpu.dot_dimension_numbers<[1], [0], [0], [1], [0, 0, 1, 1], [], []>} : vector<4x128xbf16>, vector<128x128xbf16>, vector<4x128xf32> -> vector<4x128xf32>
    %40 = arith.addf %36, %39 : vector<4x128xf32>
    %c0_26 = arith.constant 0 : index
    %c0_27 = arith.constant 0 : index
    %41 = vector.load %arg15[%c0_26, %c0_27] : memref<4x128xf32, #tpu.memory_space<vmem>>, vector<4x128xf32>
    tpu.vector_store %arg15[%c0_26, %c0_27], %40 {strides = array<i32>} : memref<4x128xf32, #tpu.memory_space<vmem>>, vector<4x128xf32>,
    %c0_28 = arith.constant 0 : index
    %c0_29 = arith.constant 0 : index
    %42 = vector.load %arg16[%c0_28, %c0_29] : memref<1x128xf32, #tpu.memory_space<vmem>>, vector<1x128xf32>
    tpu.vector_store %arg16[%c0_28, %c0_29], %22 {strides = array<i32>} : memref<1x128xf32, #tpu.memory_space<vmem>>, vector<1x128xf32>,
    %c1_i32 = arith.constant 1 : i32
    %43 = arith.cmpi eq, %arg2, %c1_i32 : i32
    %44 = arith.extui %43 : i1 to i32
    %c0_i32_30 = arith.constant 0 : i32
    %45 = arith.cmpi ne, %44, %c0_i32_30 : i32
    scf.if %45 {
      %c0_31 = arith.constant 0 : index
      %c0_32 = arith.constant 0 : index
      %46 = vector.load %arg17[%c0_31, %c0_32] : memref<1x128xf32, #tpu.memory_space<vmem>>, vector<1x128xf32>
      %47 = tpu.reciprocal %46 {approx = true} : vector<1x128xf32> -> vector<1x128xf32>
      %c0_33 = arith.constant 0 : index
      %c0_34 = arith.constant 0 : index
      %48 = vector.load %arg15[%c0_33, %c0_34] : memref<4x128xf32, #tpu.memory_space<vmem>>, vector<4x128xf32>
      %49 = vector.broadcast %47 : vector<1x128xf32> to vector<4x128xf32>
      %50 = arith.mulf %48, %49 : vector<4x128xf32>
      %c0_35 = arith.constant 0 : index
      %c0_36 = arith.constant 0 : index
      %51 = vector.load %arg8[%c0_35, %c0_36] : memref<4x4xf32, #tpu.memory_space<vmem>>, vector<4x4xf32>
      %cst_37 = arith.constant dense<0.000000e+00> : vector<4x128xf32>
      %52 = tpu.matmul %51, %50, %cst_37 {dimension_numbers = #tpu.dot_dimension_numbers<[1], [0], [0], [1], [0, 0, 1, 1], [], []>} : vector<4x4xf32>, vector<4x128xf32>, vector<4x128xf32> -> vector<4x128xf32>
      %c0_38 = arith.constant 0 : index
      %c0_39 = arith.constant 0 : index
      %53 = vector.load %arg12[%c0_38, %c0_39] : memref<4x1xf32, #tpu.memory_space<vmem>>, vector<4x1xf32>
      %54 = vector.broadcast %53 : vector<4x1xf32> to vector<4x128xf32>
      %55 = arith.addf %52, %54 : vector<4x128xf32>
      %c0_40 = arith.constant 0 : index
      %c0_41 = arith.constant 0 : index
      %c0_42 = arith.constant 0 : index
      %56 = vector.load %arg13[%c0_40, %c0_41, %c0_42] : memref<1x4x128xf32, #tpu.memory_space<vmem>>, vector<1x4x128xf32>
      %57 = vector.shape_cast %56 : vector<1x4x128xf32> to vector<4x128xf32>
      %58 = vector.shape_cast %55 : vector<4x128xf32> to vector<1x4x128xf32>
      tpu.vector_store %arg13[%c0_40, %c0_41, %c0_42], %58 {strides = array<i32>} : memref<1x4x128xf32, #tpu.memory_space<vmem>>, vector<1x4x128xf32>,
    } else {
    }
    return
  }
  func.func @transform_0(%arg0: i32, %arg1: i32, %arg2: i32) -> (i32, i32, i32) {
    %c0_i32 = arith.constant 0 : i32
    %c0_i32_0 = arith.constant 0 : i32
    return %arg0, %c0_i32, %arg1 : i32, i32, i32
  }
  func.func @transform_1(%arg0: i32, %arg1: i32, %arg2: i32) -> (i32, i32, i32) {
    %c0_i32 = arith.constant 0 : i32
    %c0_i32_0 = arith.constant 0 : i32
    return %arg0, %c0_i32, %arg2 : i32, i32, i32
  }
  func.func @transform_2(%arg0: i32, %arg1: i32, %arg2: i32) -> (i32, i32) {
    %c0_i32 = arith.constant 0 : i32
    %c0_i32_0 = arith.constant 0 : i32
    %c0_i32_1 = arith.constant 0 : i32
    return %c0_i32, %c0_i32_0 : i32, i32
  }
  func.func @transform_3(%arg0: i32, %arg1: i32, %arg2: i32) -> (i32, i32) {
    %c0_i32 = arith.constant 0 : i32
    %c0_i32_0 = arith.constant 0 : i32
    %c0_i32_1 = arith.constant 0 : i32
    return %c0_i32, %c0_i32_0 : i32, i32
  }
  func.func @transform_4(%arg0: i32, %arg1: i32, %arg2: i32) -> (i32, i32) {
    %c0_i32 = arith.constant 0 : i32
    %c0_i32_0 = arith.constant 0 : i32
    %c0_i32_1 = arith.constant 0 : i32
    return %c0_i32, %c0_i32_0 : i32, i32
  }
  func.func @transform_5(%arg0: i32, %arg1: i32, %arg2: i32) -> (i32, i32) {
    %c0_i32 = arith.constant 0 : i32
    %c0_i32_0 = arith.constant 0 : i32
    %c0_i32_1 = arith.constant 0 : i32
    return %c0_i32, %c0_i32_0 : i32, i32
  }
  func.func @transform_6(%arg0: i32, %arg1: i32, %arg2: i32) -> (i32, i32) {
    %c0_i32 = arith.constant 0 : i32
    %c0_i32_0 = arith.constant 0 : i32
    %c0_i32_1 = arith.constant 0 : i32
    return %c0_i32, %c0_i32_0 : i32, i32
  }
  func.func @transform_7(%arg0: i32, %arg1: i32, %arg2: i32) -> (i32, i32) {
    %c0_i32 = arith.constant 0 : i32
    %c0_i32_0 = arith.constant 0 : i32
    %c0_i32_1 = arith.constant 0 : i32
    return %c0_i32, %c0_i32_0 : i32, i32
  }
  func.func @transform_8(%arg0: i32, %arg1: i32, %arg2: i32) -> (i32, i32) {
    %c0_i32 = arith.constant 0 : i32
    %c0_i32_0 = arith.constant 0 : i32
    %c0_i32_1 = arith.constant 0 : i32
    return %c0_i32, %c0_i32_0 : i32, i32
  }
  func.func @transform_9(%arg0: i32, %arg1: i32, %arg2: i32) -> (i32, i32) {
    %c0_i32 = arith.constant 0 : i32
    %c0_i32_0 = arith.constant 0 : i32
    %c0_i32_1 = arith.constant 0 : i32
    return %c0_i32, %c0_i32_0 : i32, i32
  }
  func.func @transform_10(%arg0: i32, %arg1: i32, %arg2: i32) -> (i32, i32, i32) {
    %c0_i32 = arith.constant 0 : i32
    %c0_i32_0 = arith.constant 0 : i32
    return %arg0, %c0_i32, %arg1 : i32, i32, i32
  }
}

</mosaic_0001>

<llo_original>
// kernel: tpu_custom_call.1
$region0: #{tpu_custom_call.1}
  #allocation0 [shape = 'u32[]', space=smem, size = 0x4, offset = 0x4, fixed_abs, tag = 'smem constant byte address 0x4 - core index']
  #allocation1 [shape = 'u32[144,128]{1,0:T(1,128)}', space=vmem, size = 0x12000, scoped, tag = 'internal scratch']
  #allocation2 [shape = 'f32[4,128]{1,0:T(4,128)}', space=vmem, size = 0x800, scoped, tag = 'scratch operand']
  #allocation3 [shape = 'f32[4,128]{1,0:T(4,128)}', space=vmem, size = 0x800, scoped, tag = 'scratch operand']
  #allocation4 [shape = 'f32[1,128]{1,0:T(1,128)}', space=vmem, size = 0x200, scoped, tag = 'scratch operand']
  #allocation5 [shape = 'f32[1,128]{1,0:T(1,128)}', space=vmem, size = 0x200, scoped, tag = 'scratch operand']
  %s0 = inlined_call_operand.vmem [shape: f32[2,4,256], index: 0, kind: input, shape index: {}]
  %s1 = inlined_call_operand.hbm [shape: f32[2,4,256], index: 1, kind: input, shape index: {}]
  %s2 = inlined_call_operand.vmem [shape: f32[4,4], index: 2, kind: input, shape index: {}]
  %s3 = inlined_call_operand.vmem [shape: f32[4,4], index: 3, kind: input, shape index: {}]
  %s4 = inlined_call_operand.vmem [shape: f32[4,4], index: 4, kind: input, shape index: {}]
  %s5 = inlined_call_operand.vmem [shape: f32[4,4], index: 5, kind: input, shape index: {}]
  %s6 = inlined_call_operand.vmem [shape: f32[4,1], index: 6, kind: input, shape index: {}]
  %s7 = inlined_call_operand.vmem [shape: f32[4,1], index: 7, kind: input, shape index: {}]
  %s8 = inlined_call_operand.vmem [shape: f32[4,1], index: 8, kind: input, shape index: {}]
  %s9 = inlined_call_operand.vmem [shape: f32[4,1], index: 9, kind: input, shape index: {}]
  %s10 = inlined_call_operand.hbm [shape: f32[2,4,256], index: 10, kind: output, shape index: {}]
  %s11 = sld [smem:[#allocation0]]
  $region85: #{tpu_custom_call.1} parent=0
    _
  %s13 = ssub.s32 1, %s11
  %s14 = scalar_select 0, %s13, %s11
  $region1: #{tpu_custom_call.1} parent=0
    #allocation6 [shape = 'u8[4096]{0}', space=vmem, size = 0x1000, scoped, tag = 'input window, operand 1']
    #allocation7 [shape = 's32[2]{0}', space=sflag, size = 0x8, scoped, tag = 'scoped memory for tpu_custom_call.1']
    #allocation8 [shape = 's32[2]{0}', space=sflag, size = 0x8, scoped, tag = 'scoped memory for tpu_custom_call.1']
    #allocation9 [shape = 'u8[4096]{0}', space=vmem, size = 0x1000, scoped, tag = 'output window, operand 0']
    %15 = vsyncpa [#allocation7], 0
    %s16 = scalar_lea.sflag [#allocation7], 1
    %17 = vsyncpa %s16, 0
    %18 = vsyncpa [#allocation8], 0
    %s19 = scalar_lea.sflag [#allocation8], 1
    %20 = vsyncpa %s19, 0
    loop: start=0, step=1, limit=10
    $region2: #{tpu_custom_call.1} parent=1 // loop_pre_header
      _
    $region3: #{tpu_custom_call.1} parent=1 // loop_header
      %s22 = sphi 0, %s26
      %p23 = scmp.ge.s32.totalorder %s22, 10
      %s29 = sphi 0, %s48
      %s30 = sphi 0, %s44
      %s31 = sphi 0, %s40
      %s32 = sphi 0, %s29
      %s33 = sphi 0, %s30
      %s34 = sphi 0, %s31
      %s35 = sphi 0, %s32
      %s36 = sphi 0, %s33
      %s37 = sphi 0, %s34
      %s53 = sphi 0, %s55
      %s56 = sphi 0, %s53
      %s57 = sphi 0, %s56
      %s73 = sphi 0, %s57
      %s81 = sphi 0, %s83
      %s84 = sphi 0, %s81
      %s85 = sphi 0, %s84
      %s101 = sphi 0, %s85
      %s105 = sphi 0, %s105
      %s107 = sphi 0, %s105
      %s108 = sphi 0, %s107
      %s122 = sphi 0, %s108
      %s126 = sphi 0, %s126
      %s128 = sphi 0, %s126
      %s129 = sphi 0, %s128
      %s143 = sphi 0, %s129
      %s147 = sphi 0, %s147
      %s149 = sphi 0, %s147
      %s150 = sphi 0, %s149
      %s164 = sphi 0, %s150
      %s168 = sphi 0, %s168
      %s170 = sphi 0, %s168
      %s171 = sphi 0, %s170
      %s185 = sphi 0, %s171
      %s189 = sphi 0, %s189
      %s191 = sphi 0, %s189
      %s192 = sphi 0, %s191
      %s206 = sphi 0, %s192
      %s210 = sphi 0, %s210
      %s212 = sphi 0, %s210
      %s213 = sphi 0, %s212
      %s227 = sphi 0, %s213
      %s231 = sphi 0, %s231
      %s233 = sphi 0, %s231
      %s234 = sphi 0, %s233
      %s248 = sphi 0, %s234
      %s252 = sphi 0, %s252
      %s254 = sphi 0, %s252
      %s255 = sphi 0, %s254
      %s269 = sphi 0, %s255
      %s277 = sphi 0, %s279
      %s280 = sphi 0, %s277
      %s281 = sphi 0, %s280
      %s297 = sphi 0, %s281
    $region4: #{tpu_custom_call.1} parent=1 // loop_header_branch
      %25 = sbr.rel (%p23) target = $region8
    $region5: #{tpu_custom_call.1} parent=1 // loop_body
      %s27 = ssub.s32 %s22, 1
      %s28 = ssub.s32 %s22, 2
      %s38 = sadd.s32 1, %s31
      %p39 = scmp.ge.s32.totalorder %s38, 2
      %s40 = scalar_select %p39, 0, %s38
      %s41 = sadd.s32 1, %s30
      %s42 = scalar_select %p39, %s41, %s30
      %p43 = scmp.ge.s32.totalorder %s42, 2
      %s44 = scalar_select %p43, 0, %s42
      %s45 = sadd.s32 1, %s29
      %s46 = scalar_select %p43, %s45, %s29
      %p47 = scmp.ge.s32.totalorder %s46, 2
      %s48 = scalar_select %p47, 0, %s46
      %s49 = ssub.s32 %s29, %s48
      %s50 = ssub.s32 %s30, %s44
      %s51 = sor.u32 %s49, %s50
      %p52 = scmp.eq.s32.totalorder %s51, 0
      %s54 = sadd.s32 %s53, 1
      %s55 = scalar_select %p52, %s53, %s54
      %p58 = pneg %p52
      %p59 = scmp.eq.s32.totalorder %s22, 7
      %p60 = por %p58, %p59
      %p61 = scmp.ne.s32.totalorder %s53, %s56
      %p62 = scmp.eq.s32.totalorder %s22, 0
      %p63 = por %p61, %p62
      %p64 = scmp.ne.s32.totalorder %s53, %s56
      %p65 = scmp.eq.s32.totalorder %s27, 7
      %p66 = por %p64, %p65
      %p67 = scmp.ne.s32.totalorder %s56, %s57
      %p68 = scmp.eq.s32.totalorder %s27, 0
      %p69 = por %p67, %p68
      %p70 = scmp.ne.s32.totalorder %s56, %s57
      %p71 = scmp.eq.s32.totalorder %s28, 7
      %p72 = por %p70, %p71
      %p74 = scmp.ne.s32.totalorder %s57, %s73
      %p75 = scmp.eq.s32.totalorder %s28, 0
      %p76 = por %p74, %p75
      %s77 = ssub.s32 %s29, %s48
      %s78 = ssub.s32 %s31, %s40
      %s79 = sor.u32 %s77, %s78
      %p80 = scmp.eq.s32.totalorder %s79, 0
      %s82 = sadd.s32 %s81, 1
      %s83 = scalar_select %p80, %s81, %s82
      %p86 = pneg %p80
      %p87 = scmp.eq.s32.totalorder %s22, 7
      %p88 = por %p86, %p87
      %p89 = scmp.ne.s32.totalorder %s81, %s84
      %p90 = scmp.eq.s32.totalorder %s22, 0
      %p91 = por %p89, %p90
      %p92 = scmp.ne.s32.totalorder %s81, %s84
      %p93 = scmp.eq.s32.totalorder %s27, 7
      %p94 = por %p92, %p93
      %p95 = scmp.ne.s32.totalorder %s84, %s85
      %p96 = scmp.eq.s32.totalorder %s27, 0
      %p97 = por %p95, %p96
      %p98 = scmp.ne.s32.totalorder %s84, %s85
      %p99 = scmp.eq.s32.totalorder %s28, 7
      %p100 = por %p98, %p99
      %p102 = scmp.ne.s32.totalorder %s85, %s101
      %p103 = scmp.eq.s32.totalorder %s28, 0
      %p104 = por %p102, %p103
      %s106 = sadd.s32 %s105, 1
      %p109 = scmp.eq.s32.totalorder %s22, 7
      %p110 = scmp.ne.s32.totalorder %s105, %s107
      %p111 = scmp.eq.s32.totalorder %s22, 0
      %p112 = por %p110, %p111
      %p113 = scmp.ne.s32.totalorder %s105, %s107
      %p114 = scmp.eq.s32.totalorder %s27, 7
      %p115 = por %p113, %p114
      %p116 = scmp.ne.s32.totalorder %s107, %s108
      %p117 = scmp.eq.s32.totalorder %s27, 0
      %p118 = por %p116, %p117
      %p119 = scmp.ne.s32.totalorder %s107, %s108
      %p120 = scmp.eq.s32.totalorder %s28, 7
      %p121 = por %p119, %p120
      %p123 = scmp.ne.s32.totalorder %s108, %s122
      %p124 = scmp.eq.s32.totalorder %s28, 0
      %p125 = por %p123, %p124
      %s127 = sadd.s32 %s126, 1
      %p130 = scmp.eq.s32.totalorder %s22, 7
      %p131 = scmp.ne.s32.totalorder %s126, %s128
      %p132 = scmp.eq.s32.totalorder %s22, 0
      %p133 = por %p131, %p132
      %p134 = scmp.ne.s32.totalorder %s126, %s128
      %p135 = scmp.eq.s32.totalorder %s27, 7
      %p136 = por %p134, %p135
      %p137 = scmp.ne.s32.totalorder %s128, %s129
      %p138 = scmp.eq.s32.totalorder %s27, 0
      %p139 = por %p137, %p138
      %p140 = scmp.ne.s32.totalorder %s128, %s129
      %p141 = scmp.eq.s32.totalorder %s28, 7
      %p142 = por %p140, %p141
      %p144 = scmp.ne.s32.totalorder %s129, %s143
      %p145 = scmp.eq.s32.totalorder %s28, 0
      %p146 = por %p144, %p145
      %s148 = sadd.s32 %s147, 1
      %p151 = scmp.eq.s32.totalorder %s22, 7
      %p152 = scmp.ne.s32.totalorder %s147, %s149
      %p153 = scmp.eq.s32.totalorder %s22, 0
      %p154 = por %p152, %p153
      %p155 = scmp.ne.s32.totalorder %s147, %s149
      %p156 = scmp.eq.s32.totalorder %s27, 7
      %p157 = por %p155, %p156
      %p158 = scmp.ne.s32.totalorder %s149, %s150
      %p159 = scmp.eq.s32.totalorder %s27, 0
      %p160 = por %p158, %p159
      %p161 = scmp.ne.s32.totalorder %s149, %s150
      %p162 = scmp.eq.s32.totalorder %s28, 7
      %p163 = por %p161, %p162
      %p165 = scmp.ne.s32.totalorder %s150, %s164
      %p166 = scmp.eq.s32.totalorder %s28, 0
      %p167 = por %p165, %p166
      %s169 = sadd.s32 %s168, 1
      %p172 = scmp.eq.s32.totalorder %s22, 7
      %p173 = scmp.ne.s32.totalorder %s168, %s170
      %p174 = scmp.eq.s32.totalorder %s22, 0
      %p175 = por %p173, %p174
      %p176 = scmp.ne.s32.totalorder %s168, %s170
      %p177 = scmp.eq.s32.totalorder %s27, 7
      %p178 = por %p176, %p177
      %p179 = scmp.ne.s32.totalorder %s170, %s171
      %p180 = scmp.eq.s32.totalorder %s27, 0
      %p181 = por %p179, %p180
      %p182 = scmp.ne.s32.totalorder %s170, %s171
      %p183 = scmp.eq.s32.totalorder %s28, 7
      %p184 = por %p182, %p183
      %p186 = scmp.ne.s32.totalorder %s171, %s185
      %p187 = scmp.eq.s32.totalorder %s28, 0
      %p188 = por %p186, %p187
      %s190 = sadd.s32 %s189, 1
      %p193 = scmp.eq.s32.totalorder %s22, 7
      %p194 = scmp.ne.s32.totalorder %s189, %s191
      %p195 = scmp.eq.s32.totalorder %s22, 0
      %p196 = por %p194, %p195
      %p197 = scmp.ne.s32.totalorder %s189, %s191
      %p198 = scmp.eq.s32.totalorder %s27, 7
      %p199 = por %p197, %p198
      %p200 = scmp.ne.s32.totalorder %s191, %s192
      %p201 = scmp.eq.s32.totalorder %s27, 0
      %p202 = por %p200, %p201
      %p203 = scmp.ne.s32.totalorder %s191, %s192
      %p204 = scmp.eq.s32.totalorder %s28, 7
      %p205 = por %p203, %p204
      %p207 = scmp.ne.s32.totalorder %s192, %s206
      %p208 = scmp.eq.s32.totalorder %s28, 0
      %p209 = por %p207, %p208
      %s211 = sadd.s32 %s210, 1
      %p214 = scmp.eq.s32.totalorder %s22, 7
      %p215 = scmp.ne.s32.totalorder %s210, %s212
      %p216 = scmp.eq.s32.totalorder %s22, 0
      %p217 = por %p215, %p216
      %p218 = scmp.ne.s32.totalorder %s210, %s212
      %p219 = scmp.eq.s32.totalorder %s27, 7
      %p220 = por %p218, %p219
      %p221 = scmp.ne.s32.totalorder %s212, %s213
      %p222 = scmp.eq.s32.totalorder %s27, 0
      %p223 = por %p221, %p222
      %p224 = scmp.ne.s32.totalorder %s212, %s213
      %p225 = scmp.eq.s32.totalorder %s28, 7
      %p226 = por %p224, %p225
      %p228 = scmp.ne.s32.totalorder %s213, %s227
      %p229 = scmp.eq.s32.totalorder %s28, 0
      %p230 = por %p228, %p229
      %s232 = sadd.s32 %s231, 1
      %p235 = scmp.eq.s32.totalorder %s22, 7
      %p236 = scmp.ne.s32.totalorder %s231, %s233
      %p237 = scmp.eq.s32.totalorder %s22, 0
      %p238 = por %p236, %p237
      %p239 = scmp.ne.s32.totalorder %s231, %s233
      %p240 = scmp.eq.s32.totalorder %s27, 7
      %p241 = por %p239, %p240
      %p242 = scmp.ne.s32.totalorder %s233, %s234
      %p243 = scmp.eq.s32.totalorder %s27, 0
      %p244 = por %p242, %p243
      %p245 = scmp.ne.s32.totalorder %s233, %s234
      %p246 = scmp.eq.s32.totalorder %s28, 7
      %p247 = por %p245, %p246
      %p249 = scmp.ne.s32.totalorder %s234, %s248
      %p250 = scmp.eq.s32.totalorder %s28, 0
      %p251 = por %p249, %p250
      %s253 = sadd.s32 %s252, 1
      %p256 = scmp.eq.s32.totalorder %s22, 7
      %p257 = scmp.ne.s32.totalorder %s252, %s254
      %p258 = scmp.eq.s32.totalorder %s22, 0
      %p259 = por %p257, %p258
      %p260 = scmp.ne.s32.totalorder %s252, %s254
      %p261 = scmp.eq.s32.totalorder %s27, 7
      %p262 = por %p260, %p261
      %p263 = scmp.ne.s32.totalorder %s254, %s255
      %p264 = scmp.eq.s32.totalorder %s27, 0
      %p265 = por %p263, %p264
      %p266 = scmp.ne.s32.totalorder %s254, %s255
      %p267 = scmp.eq.s32.totalorder %s28, 7
      %p268 = por %p266, %p267
      %p270 = scmp.ne.s32.totalorder %s255, %s269
      %p271 = scmp.eq.s32.totalorder %s28, 0
      %p272 = por %p270, %p271
      %s273 = ssub.s32 %s29, %s48
      %s274 = ssub.s32 %s30, %s44
      %s275 = sor.u32 %s273, %s274
      %p276 = scmp.eq.s32.totalorder %s275, 0
      %s278 = sadd.s32 %s277, 1
      %s279 = scalar_select %p276, %s277, %s278
      %p282 = pneg %p276
      %p283 = scmp.eq.s32.totalorder %s22, 7
      %p284 = por %p282, %p283
      %p285 = scmp.ne.s32.totalorder %s277, %s280
      %p286 = scmp.eq.s32.totalorder %s22, 0
      %p287 = por %p285, %p286
      %p288 = scmp.ne.s32.totalorder %s277, %s280
      %p289 = scmp.eq.s32.totalorder %s27, 7
      %p290 = por %p288, %p289
      %p291 = scmp.ne.s32.totalorder %s280, %s281
      %p292 = scmp.eq.s32.totalorder %s27, 0
      %p293 = por %p291, %p292
      %p294 = scmp.ne.s32.totalorder %s280, %s281
      %p295 = scmp.eq.s32.totalorder %s28, 7
      %p296 = por %p294, %p295
      %p298 = scmp.ne.s32.totalorder %s281, %s297
      %p299 = scmp.eq.s32.totalorder %s28, 0
      %p300 = por %p298, %p299
      %p301 = scmp.le.s32.totalorder 1, %s22
      %p302 = scmp.lt.s32.totalorder %s22, 9
      %p303 = pnand %p301, %p302
      %p304 = pneg %p303
      // Predicated region
      $region9: #{tpu_custom_call.1} parent=5 // pred_check
        _
      $region10: #{tpu_custom_call.1} parent=5 // pred_check_branch
        %306 = sbr.rel (%p303) target = $region12
      $region11: #{tpu_custom_call.1} parent=5 // pred_region
        %s307 = ssub.s32 %s22, 1
        // Predicated region
        $region13: #{tpu_custom_call.1} parent=11 // pred_check
          %p308 = pneg %p118
        $region14: #{tpu_custom_call.1} parent=11 // pred_check_branch
          %310 = sbr.rel (%p308) target = $region16
        $region15: #{tpu_custom_call.1} parent=11 // pred_region
          _
        $region16: #{tpu_custom_call.1} parent=11 // pred_fallthru
          _
        // Predicated region
        $region17: #{tpu_custom_call.1} parent=11 // pred_check
          %p311 = pneg %p139
        $region18: #{tpu_custom_call.1} parent=11 // pred_check_branch
          %313 = sbr.rel (%p311) target = $region20
        $region19: #{tpu_custom_call.1} parent=11 // pred_region
          _
        $region20: #{tpu_custom_call.1} parent=11 // pred_fallthru
          _
        // Predicated region
        $region21: #{tpu_custom_call.1} parent=11 // pred_check
          %p314 = pneg %p160
        $region22: #{tpu_custom_call.1} parent=11 // pred_check_branch
          %316 = sbr.rel (%p314) target = $region24
        $region23: #{tpu_custom_call.1} parent=11 // pred_region
          _
        $region24: #{tpu_custom_call.1} parent=11 // pred_fallthru
          _
        // Predicated region
        $region25: #{tpu_custom_call.1} parent=11 // pred_check
          %p317 = pneg %p181
        $region26: #{tpu_custom_call.1} parent=11 // pred_check_branch
          %319 = sbr.rel (%p317) target = $region28
        $region27: #{tpu_custom_call.1} parent=11 // pred_region
          _
        $region28: #{tpu_custom_call.1} parent=11 // pred_fallthru
          _
        // Predicated region
        $region29: #{tpu_custom_call.1} parent=11 // pred_check
          %p320 = pneg %p202
        $region30: #{tpu_custom_call.1} parent=11 // pred_check_branch
          %322 = sbr.rel (%p320) target = $region32
        $region31: #{tpu_custom_call.1} parent=11 // pred_region
          _
        $region32: #{tpu_custom_call.1} parent=11 // pred_fallthru
          _
        // Predicated region
        $region33: #{tpu_custom_call.1} parent=11 // pred_check
          %p323 = pneg %p223
        $region34: #{tpu_custom_call.1} parent=11 // pred_check_branch
          %325 = sbr.rel (%p323) target = $region36
        $region35: #{tpu_custom_call.1} parent=11 // pred_region
          _
        $region36: #{tpu_custom_call.1} parent=11 // pred_fallthru
          _
        // Predicated region
        $region37: #{tpu_custom_call.1} parent=11 // pred_check
          %p326 = pneg %p244
        $region38: #{tpu_custom_call.1} parent=11 // pred_check_branch
          %328 = sbr.rel (%p326) target = $region40
        $region39: #{tpu_custom_call.1} parent=11 // pred_region
          _
        $region40: #{tpu_custom_call.1} parent=11 // pred_fallthru
          _
        // Predicated region
        $region41: #{tpu_custom_call.1} parent=11 // pred_check
          %p329 = pneg %p265
        $region42: #{tpu_custom_call.1} parent=11 // pred_check_branch
          %331 = sbr.rel (%p329) target = $region44
        $region43: #{tpu_custom_call.1} parent=11 // pred_region
          _
        $region44: #{tpu_custom_call.1} parent=11 // pred_fallthru
          _
      $region12: #{tpu_custom_call.1} parent=5 // pred_fallthru
        _
      %p332 = scmp.lt.s32.totalorder %s22, 8
      // Predicated region
      $region45: #{tpu_custom_call.1} parent=5 // pred_check
        %p333 = pneg %p332
      $region46: #{tpu_custom_call.1} parent=5 // pred_check_branch
        %335 = sbr.rel (%p333) target = $region48
      $region47: #{tpu_custom_call.1} parent=5 // pred_region
        // Predicated region
        $region49: #{tpu_custom_call.1} parent=47 // pred_check
          %p336 = pneg %p63
        $region50: #{tpu_custom_call.1} parent=47 // pred_check_branch
          %338 = sbr.rel (%p336) target = $region52
        $region51: #{tpu_custom_call.1} parent=47 // pred_region
          %p339 = scmp.lt.s32.totalorder %s29, 1
          %s340 = scalar_select %p339, %s29, 1
          %p341 = scmp.lt.s32.totalorder %s30, 1
          %s342 = scalar_select %p341, %s30, 1
          %s343 = smul.addr %s340, 2
          %s344 = sadd.s32 %s342, %s343
          %s345 = smul.addr %s344, 4
          %s346 = scalar_lea.vmem %s0, %s345
        $region52: #{tpu_custom_call.1} parent=47 // pred_fallthru
          _
        // Predicated region
        $region53: #{tpu_custom_call.1} parent=47 // pred_check
          %p347 = pneg %p91
        $region54: #{tpu_custom_call.1} parent=47 // pred_check_branch
          %349 = sbr.rel (%p347) target = $region56
        $region55: #{tpu_custom_call.1} parent=47 // pred_region
          %s350 = sand.u32 %s81, 1
          %s351 = scalar_lea.sflag [#allocation7], %s350
          %s352 = sand.u32 %s81, 1
          %s353 = smul.addr %s352, 4
          %s354 = scalar_lea.vmem [#allocation6], %s353
          %s356 = ssub.s32 64, 64
          %357 = vsyncadd %s351, %s356
          %s358 = smul.addr %s29, 2
          %s359 = sadd.s32 %s31, %s358
          %s360 = smul.addr %s359, 64
          %s361 = scalar_lea.hbm %s1, %s360
          %s363 = sshll.u32 %s354, 4
          %s364 = int_to_ptr.vmem [resolvable:$true] %s363
          %366 = dma.hbm_to_vmem [thread:$0]  %s361, 64, %s364, %s351
        $region56: #{tpu_custom_call.1} parent=47 // pred_fallthru
          _
      $region48: #{tpu_custom_call.1} parent=5 // pred_fallthru
        _
      %p367 = scmp.le.s32.totalorder 1, %s22
      %p368 = scmp.lt.s32.totalorder %s22, 9
      %p369 = pnand %p367, %p368
      %p370 = pneg %p369
      // Predicated region
      $region57: #{tpu_custom_call.1} parent=5 // pred_check
        _
      $region58: #{tpu_custom_call.1} parent=5 // pred_check_branch
        %372 = sbr.rel (%p369) target = $region60
      $region59: #{tpu_custom_call.1} parent=5 // pred_region
        %s373 = ssub.s32 %s22, 1
        %s374 = sand.u32 %s84, 1
        %s375 = scalar_lea.sflag [#allocation7], %s374
        %s376 = sand.u32 %s84, 1
        %s377 = smul.addr %s376, 4
        %s378 = scalar_lea.vmem [#allocation6], %s377
        // Predicated region
        $region61: #{tpu_custom_call.1} parent=59 // pred_check
          %p379 = pneg %p97
        $region62: #{tpu_custom_call.1} parent=59 // pred_check_branch
          %381 = sbr.rel (%p379) target = $region64
        $region63: #{tpu_custom_call.1} parent=59 // pred_region
          %382 = dma.done %s375, 64
        $region64: #{tpu_custom_call.1} parent=59 // pred_fallthru
          _
        %p383 = scmp.lt.s32.totalorder %s32, 1
        %s384 = scalar_select %p383, %s32, 1
        %p385 = scmp.lt.s32.totalorder %s33, 1
        %s386 = scalar_select %p385, %s33, 1
        %s387 = smul.addr %s384, 2
        %s388 = sadd.s32 %s386, %s387
        %s389 = smul.addr %s388, 4
        %s390 = scalar_lea.vmem %s0, %s389
        %p391 = pneg %p69
        %p392 = pneg %p66
        %s393 = sand.u32 %s84, 1
        %s394 = scalar_lea.sflag [#allocation7], %s393
        %s395 = sand.u32 %s84, 1
        %s396 = smul.addr %s395, 4
        %s397 = scalar_lea.vmem [#allocation6], %s396
        %p398 = pneg %p97
        %p399 = pneg %p94
        %p400 = pneg %p118
        %p401 = pneg %p115
        %p402 = pneg %p139
        %p403 = pneg %p136
        %p404 = pneg %p160
        %p405 = pneg %p157
        %p406 = pneg %p181
        %p407 = pneg %p178
        %p408 = pneg %p202
        %p409 = pneg %p199
        %p410 = pneg %p223
        %p411 = pneg %p220
        %p412 = pneg %p244
        %p413 = pneg %p241
        %p414 = pneg %p265
        %p415 = pneg %p262
        %p416 = pneg %p293
        %p417 = pneg %p290
        %s418 = sand.u32 %s280, 1
        %s419 = scalar_lea.sflag [#allocation8], %s418
        %s420 = sand.u32 %s280, 1
        %s421 = smul.addr %s420, 4
        %s422 = scalar_lea.vmem [#allocation9], %s421
        %p423 = scmp.lt.s32.totalorder %s32, 1
        %s424 = scalar_select %p423, %s32, 1
        %p425 = scmp.lt.s32.totalorder %s33, 1
        %s426 = scalar_select %p425, %s33, 1
        %s427 = smul.addr %s424, 2
        %s428 = sadd.s32 %s426, %s427
        %s429 = smul.addr %s428, 4
        %s430 = scalar_lea.vmem %s0, %s429
        %p432 = scmp.eq.s32.totalorder %s34, 0
        // Predicated region
        $region65: #{tpu_custom_call.1} parent=59 // pred_check
          %p433 = pneg %p432
        $region66: #{tpu_custom_call.1} parent=59 // pred_check_branch
          %435 = sbr.rel (%p433) target = $region68
        $region67: #{tpu_custom_call.1} parent=59 // pred_region
          %v436 = vld [vmem:[%s430] sm:$0xf]
          %v437 = vld [vmem:[%s2] sm:$0xf]
          %v438 = vld [vmem:[%s6] sm:$0xf]
          %440 = vset.pattern.permute.xlu0 0
          %441 = vperm.xlu0 %440, %v438
          %v442 = vpop.permute.xlu0 %441
          %vm444 = vcmask 31744
          %v446 = vsel %vm444, %v437, 0
          %vm448 = vcmask 1043456
          %v450 = vsel %vm448, %v436, 0
          %452 = vmatprep.subr.mxu0 0.0
          %453 = vmatpush1.msra.mxu0 %v450
          %454 = vmatprep.subr.mxu0 0.0
          %455 = vmatpush1.msra.mxu0 0.0
          %456 = vmatprep.subr.mxu0 0.0
          %457 = vmatpush1.msra.mxu0 0.0
          %458 = vmatprep.subr.mxu0 0.0
          %459 = vmatpush1.msra.mxu0 0.0
          %460 = vmatprep.subr.mxu0 0.0
          %461 = vmatpush1.msra.mxu0 0.0
          %462 = vmatprep.subr.mxu0 0.0
          %463 = vmatpush1.msra.mxu0 0.0
          %464 = vmatprep.subr.mxu0 0.0
          %465 = vmatpush1.msra.mxu0 0.0
          %466 = vmatprep.subr.mxu0 0.0
          %467 = vmatpush1.msra.mxu0 0.0
          %468 = vmatprep.subr.mxu0 0.0
          %469 = vmatpush1.msra.mxu0 0.0
          %470 = vmatprep.subr.mxu0 0.0
          %471 = vmatpush1.msra.mxu0 0.0
          %472 = vmatprep.subr.mxu0 0.0
          %473 = vmatpush1.msra.mxu0 0.0
          %474 = vmatprep.subr.mxu0 0.0
          %475 = vmatpush1.msra.mxu0 0.0
          %476 = vmatprep.subr.mxu0 0.0
          %477 = vmatpush1.msra.mxu0 0.0
          %478 = vmatprep.subr.mxu0 0.0
          %479 = vmatpush1.msra.mxu0 0.0
          %480 = vmatprep.subr.mxu0 0.0
          %481 = vmatpush1.msra.mxu0 0.0
          %482 = vmatprep.subr.mxu0 0.0
          %483 = vmatpush1.msra.mxu0 0.0
          %484 = vmatprep.subr.mxu0 0.0
          %485 = vmatpush1.msra.mxu0 0.0
          %486 = vmatprep.subr.mxu0 0.0
          %487 = vmatpush1.msra.mxu0 0.0
          %488 = vmatprep.subr.mxu0 0.0
          %489 = vmatpush1.msra.mxu0 0.0
          %490 = vmatprep.subr.mxu0 0.0
          %491 = vmatpush1.msra.mxu0 0.0
          %492 = vmatprep.subr.mxu0 0.0
          %493 = vmatpush1.msra.mxu0 0.0
          %494 = vmatprep.subr.mxu0 0.0
          %495 = vmatpush1.msra.mxu0 0.0
          %496 = vmatprep.subr.mxu0 0.0
          %497 = vmatpush1.msra.mxu0 0.0
          %498 = vmatprep.subr.mxu0 0.0
          %499 = vmatpush1.msra.mxu0 0.0
          %500 = vmatprep.subr.mxu0 0.0
          %501 = vmatpush1.msra.mxu0 0.0
          %502 = vmatprep.subr.mxu0 0.0
          %503 = vmatpush1.msra.mxu0 0.0
          %504 = vmatprep.subr.mxu0 0.0
          %505 = vmatpush1.msra.mxu0 0.0
          %506 = vmatprep.subr.mxu0 0.0
          %507 = vmatpush1.msra.mxu0 0.0
          %508 = vmatprep.subr.mxu0 0.0
          %509 = vmatpush1.msra.mxu0 0.0
          %510 = vmatprep.subr.mxu0 0.0
          %511 = vmatpush1.msra.mxu0 0.0
          %512 = vmatprep.subr.mxu0 0.0
          %513 = vmatpush1.msra.mxu0 0.0
          %514 = vmatprep.subr.mxu0 0.0
          %515 = vmatpush1.msra.mxu0 0.0
          %516 = vmatprep.mubr.f32.mxu0 0.0
          %517 = vmatmul.mubr.f32.gmra.mrb[0].mxu0 %v446
          %v518 = vpop.f32.mrb[0].mxu0
          %v519 = vadd.f32 %v442, %v518
          %v520 = vpop.f32.mrb[0].mxu0
          %521 = vdwg.mxu0
          %522 = vst [vmem:[#allocation2] sm:$0xf] %v519
          %523 = vst [vmem:[#allocation3] sm:$0xf] 0.0
          %524 = vst [vmem:[#allocation4] sm:$0x1] -inf
          %525 = vst [vmem:[#allocation5] sm:$0x1] 0.0
        $region68: #{tpu_custom_call.1} parent=59 // pred_fallthru
          _
        %v526 = vld [vmem:[%s378] sm:$0xf]
        %v527 = vld [vmem:[%s3] sm:$0xf]
        %v528 = vld [vmem:[%s7] sm:$0xf]
        %530 = vset.pattern.permute.xlu0 0
        %531 = vperm.xlu0 %530, %v528
        %v532 = vpop.permute.xlu0 %531
        %vm534 = vcmask 31744
        %v536 = vsel %vm534, %v527, 0
        %vm538 = vcmask 1043456
        %v540 = vsel %vm538, %v526, 0
        %542 = vmatprep.subr.mxu0 0.0
        %543 = vmatpush1.msra.mxu0 %v540
        %544 = vmatprep.subr.mxu0 0.0
        %545 = vmatpush1.msra.mxu0 0.0
        %546 = vmatprep.subr.mxu0 0.0
        %547 = vmatpush1.msra.mxu0 0.0
        %548 = vmatprep.subr.mxu0 0.0
        %549 = vmatpush1.msra.mxu0 0.0
        %550 = vmatprep.subr.mxu0 0.0
        %551 = vmatpush1.msra.mxu0 0.0
        %552 = vmatprep.subr.mxu0 0.0
        %553 = vmatpush1.msra.mxu0 0.0
        %554 = vmatprep.subr.mxu0 0.0
        %555 = vmatpush1.msra.mxu0 0.0
        %556 = vmatprep.subr.mxu0 0.0
        %557 = vmatpush1.msra.mxu0 0.0
        %558 = vmatprep.subr.mxu0 0.0
        %559 = vmatpush1.msra.mxu0 0.0
        %560 = vmatprep.subr.mxu0 0.0
        %561 = vmatpush1.msra.mxu0 0.0
        %562 = vmatprep.subr.mxu0 0.0
        %563 = vmatpush1.msra.mxu0 0.0
        %564 = vmatprep.subr.mxu0 0.0
        %565 = vmatpush1.msra.mxu0 0.0
        %566 = vmatprep.subr.mxu0 0.0
        %567 = vmatpush1.msra.mxu0 0.0
        %568 = vmatprep.subr.mxu0 0.0
        %569 = vmatpush1.msra.mxu0 0.0
        %570 = vmatprep.subr.mxu0 0.0
        %571 = vmatpush1.msra.mxu0 0.0
        %572 = vmatprep.subr.mxu0 0.0
        %573 = vmatpush1.msra.mxu0 0.0
        %574 = vmatprep.subr.mxu0 0.0
        %575 = vmatpush1.msra.mxu0 0.0
        %576 = vmatprep.subr.mxu0 0.0
        %577 = vmatpush1.msra.mxu0 0.0
        %578 = vmatprep.subr.mxu0 0.0
        %579 = vmatpush1.msra.mxu0 0.0
        %580 = vmatprep.subr.mxu0 0.0
        %581 = vmatpush1.msra.mxu0 0.0
        %582 = vmatprep.subr.mxu0 0.0
        %583 = vmatpush1.msra.mxu0 0.0
        %584 = vmatprep.subr.mxu0 0.0
        %585 = vmatpush1.msra.mxu0 0.0
        %586 = vmatprep.subr.mxu0 0.0
        %587 = vmatpush1.msra.mxu0 0.0
        %588 = vmatprep.subr.mxu0 0.0
        %589 = vmatpush1.msra.mxu0 0.0
        %590 = vmatprep.subr.mxu0 0.0
        %591 = vmatpush1.msra.mxu0 0.0
        %592 = vmatprep.subr.mxu0 0.0
        %593 = vmatpush1.msra.mxu0 0.0
        %594 = vmatprep.subr.mxu0 0.0
        %595 = vmatpush1.msra.mxu0 0.0
        %596 = vmatprep.subr.mxu0 0.0
        %597 = vmatpush1.msra.mxu0 0.0
        %598 = vmatprep.subr.mxu0 0.0
        %599 = vmatpush1.msra.mxu0 0.0
        %600 = vmatprep.subr.mxu0 0.0
        %601 = vmatpush1.msra.mxu0 0.0
        %602 = vmatprep.subr.mxu0 0.0
        %603 = vmatpush1.msra.mxu0 0.0
        %604 = vmatprep.subr.mxu0 0.0
        %605 = vmatpush1.msra.mxu0 0.0
        %606 = vmatprep.mubr.f32.mxu0 0.0
        %607 = vmatmul.mubr.f32.gmra.mrb[0].mxu0 %v536
        %v608 = vpop.f32.mrb[0].mxu0
        %v609 = vadd.f32 %v532, %v608
        %v610 = vpop.f32.mrb[0].mxu0
        %611 = vdwg.mxu0
        %v612 = vld [vmem:[%s4] sm:$0xf]
        %v613 = vld [vmem:[%s8] sm:$0xf]
        %615 = vset.pattern.permute.xlu0 0
        %616 = vperm.xlu0 %615, %v613
        %v617 = vpop.permute.xlu0 %616
        %v620 = vsel %vm534, %v612, 0
        %622 = vmatprep.subr.mxu0 0.0
        %623 = vmatpush1.msra.mxu0 %v540
        %624 = vmatprep.subr.mxu0 0.0
        %625 = vmatpush1.msra.mxu0 0.0
        %626 = vmatprep.subr.mxu0 0.0
        %627 = vmatpush1.msra.mxu0 0.0
        %628 = vmatprep.subr.mxu0 0.0
        %629 = vmatpush1.msra.mxu0 0.0
        %630 = vmatprep.subr.mxu0 0.0
        %631 = vmatpush1.msra.mxu0 0.0
        %632 = vmatprep.subr.mxu0 0.0
        %633 = vmatpush1.msra.mxu0 0.0
        %634 = vmatprep.subr.mxu0 0.0
        %635 = vmatpush1.msra.mxu0 0.0
        %636 = vmatprep.subr.mxu0 0.0
        %637 = vmatpush1.msra.mxu0 0.0
        %638 = vmatprep.subr.mxu0 0.0
        %639 = vmatpush1.msra.mxu0 0.0
        %640 = vmatprep.subr.mxu0 0.0
        %641 = vmatpush1.msra.mxu0 0.0
        %642 = vmatprep.subr.mxu0 0.0
        %643 = vmatpush1.msra.mxu0 0.0
        %644 = vmatprep.subr.mxu0 0.0
        %645 = vmatpush1.msra.mxu0 0.0
        %646 = vmatprep.subr.mxu0 0.0
        %647 = vmatpush1.msra.mxu0 0.0
        %648 = vmatprep.subr.mxu0 0.0
        %649 = vmatpush1.msra.mxu0 0.0
        %650 = vmatprep.subr.mxu0 0.0
        %651 = vmatpush1.msra.mxu0 0.0
        %652 = vmatprep.subr.mxu0 0.0
        %653 = vmatpush1.msra.mxu0 0.0
        %654 = vmatprep.subr.mxu0 0.0
        %655 = vmatpush1.msra.mxu0 0.0
        %656 = vmatprep.subr.mxu0 0.0
        %657 = vmatpush1.msra.mxu0 0.0
        %658 = vmatprep.subr.mxu0 0.0
        %659 = vmatpush1.msra.mxu0 0.0
        %660 = vmatprep.subr.mxu0 0.0
        %661 = vmatpush1.msra.mxu0 0.0
        %662 = vmatprep.subr.mxu0 0.0
        %663 = vmatpush1.msra.mxu0 0.0
        %664 = vmatprep.subr.mxu0 0.0
        %665 = vmatpush1.msra.mxu0 0.0
        %666 = vmatprep.subr.mxu0 0.0
        %667 = vmatpush1.msra.mxu0 0.0
        %668 = vmatprep.subr.mxu0 0.0
        %669 = vmatpush1.msra.mxu0 0.0
        %670 = vmatprep.subr.mxu0 0.0
        %671 = vmatpush1.msra.mxu0 0.0
        %672 = vmatprep.subr.mxu0 0.0
        %673 = vmatpush1.msra.mxu0 0.0
        %674 = vmatprep.subr.mxu0 0.0
        %675 = vmatpush1.msra.mxu0 0.0
        %676 = vmatprep.subr.mxu0 0.0
        %677 = vmatpush1.msra.mxu0 0.0
        %678 = vmatprep.subr.mxu0 0.0
        %679 = vmatpush1.msra.mxu0 0.0
        %680 = vmatprep.subr.mxu0 0.0
        %681 = vmatpush1.msra.mxu0 0.0
        %682 = vmatprep.subr.mxu0 0.0
        %683 = vmatpush1.msra.mxu0 0.0
        %684 = vmatprep.subr.mxu0 0.0
        %685 = vmatpush1.msra.mxu0 0.0
        %686 = vmatprep.mubr.f32.mxu0 0.0
        %687 = vmatmul.mubr.f32.gmra.mrb[0].mxu0 %v620
        %v688 = vpop.f32.mrb[0].mxu0
        %v689 = vadd.f32 %v617, %v688
        %v690 = vpop.f32.mrb[0].mxu0
        %691 = vdwg.mxu0
        %v692 = vpack.c.bf16 %v609, %v609
        %v693 = vld [vmem:[#allocation2] sm:$0xf]
        %v694 = vpack.c.bf16 %v693, %v693
        %695 = vxpose.xlu0.c.b16.start [1/8] %v692, 128
        %696 = vxpose.xlu0.c.b16.cont [2/8] 0, 128
        %697 = vxpose.xlu0.c.b16.cont [3/8] 0, 128
        %698 = vxpose.xlu0.c.b16.cont [4/8] 0, 128
        %699 = vxpose.xlu0.c.b16.cont [5/8] 0, 128
        %700 = vxpose.xlu0.c.b16.cont [6/8] 0, 128
        %701 = vxpose.xlu0.c.b16.cont [7/8] 0, 128
        %702 = vxpose.xlu0.c.b16.end [8/8] 0, 128
        %v703 = vpop.trf.xlu0
        %v704 = vpop.trf.xlu0
        %v705 = vpop.trf.xlu0
        %v706 = vpop.trf.xlu0
        %v707 = vpop.trf.xlu0
        %v708 = vpop.trf.xlu0
        %v709 = vpop.trf.xlu0
        %v710 = vpop.trf.xlu0
        %v712 = vsel %vm534, %v703, 0
        %v715 = vsel %vm534, %v704, 0
        %v718 = vsel %vm534, %v705, 0
        %v721 = vsel %vm534, %v706, 0
        %v724 = vsel %vm534, %v707, 0
        %v727 = vsel %vm534, %v708, 0
        %v730 = vsel %vm534, %v709, 0
        %v733 = vsel %vm534, %v710, 0
        %vm735 = vcmask 1041408
        %v737 = vsel %vm735, %v694, 0
        %739 = vmatprep.subr.bf16.mxu0 0
        %740 = vmatpush1.bf16.msra.mxu0 %v737
        %741 = vmatprep.subr.bf16.mxu0 0
        %742 = vmatpush1.bf16.msra.mxu0 0
        %743 = vmatprep.subr.bf16.mxu0 0
        %744 = vmatpush1.bf16.msra.mxu0 0
        %745 = vmatprep.subr.bf16.mxu0 0
        %746 = vmatpush1.bf16.msra.mxu0 0
        %747 = vmatprep.subr.bf16.mxu0 0
        %748 = vmatpush1.bf16.msra.mxu0 0
        %749 = vmatprep.subr.bf16.mxu0 0
        %750 = vmatpush1.bf16.msra.mxu0 0
        %751 = vmatprep.subr.bf16.mxu0 0
        %752 = vmatpush1.bf16.msra.mxu0 0
        %753 = vmatprep.subr.bf16.mxu0 0
        %754 = vmatpush1.bf16.msra.mxu0 0
        %755 = vmatprep.subr.bf16.mxu0 0
        %756 = vmatpush1.bf16.msra.mxu0 0
        %757 = vmatprep.subr.bf16.mxu0 0
        %758 = vmatpush1.bf16.msra.mxu0 0
        %759 = vmatprep.subr.bf16.mxu0 0
        %760 = vmatpush1.bf16.msra.mxu0 0
        %761 = vmatprep.subr.bf16.mxu0 0
        %762 = vmatpush1.bf16.msra.mxu0 0
        %763 = vmatprep.subr.bf16.mxu0 0
        %764 = vmatpush1.bf16.msra.mxu0 0
        %765 = vmatprep.subr.bf16.mxu0 0
        %766 = vmatpush1.bf16.msra.mxu0 0
        %767 = vmatprep.subr.bf16.mxu0 0
        %768 = vmatpush1.bf16.msra.mxu0 0
        %769 = vmatprep.subr.bf16.mxu0 0
        %770 = vmatpush1.bf16.msra.mxu0 0
        %771 = vmatprep.mubr.bf16.mxu0 0
        %772 = vmatmul.mubr.bf16.gmra.mrb[0].mxu0 %v712
        %v773 = vpop.f32.mrb[0].mxu0
        %v774 = vadd.f32 0.0, %v773
        %v775 = vpop.f32.mrb[0].mxu0
        %v776 = vpop.f32.mrb[0].mxu0
        %v777 = vadd.f32 0.0, %v776
        %v778 = vpop.f32.mrb[0].mxu0
        %779 = vmatprep.mubr.bf16.mxu0 0
        %780 = vmatmul.mubr.bf16.gmra.mrb[0].mxu0 %v715
        %v781 = vpop.f32.mrb[0].mxu0
        %v782 = vadd.f32 0.0, %v781
        %v783 = vpop.f32.mrb[0].mxu0
        %v784 = vpop.f32.mrb[0].mxu0
        %v785 = vadd.f32 0.0, %v784
        %v786 = vpop.f32.mrb[0].mxu0
        %787 = vmatprep.mubr.bf16.mxu0 0
        %788 = vmatmul.mubr.bf16.gmra.mrb[0].mxu0 %v718
        %v789 = vpop.f32.mrb[0].mxu0
        %v790 = vadd.f32 0.0, %v789
        %v791 = vpop.f32.mrb[0].mxu0
        %v792 = vpop.f32.mrb[0].mxu0
        %v793 = vadd.f32 0.0, %v792
        %v794 = vpop.f32.mrb[0].mxu0
        %795 = vmatprep.mubr.bf16.mxu0 0
        %796 = vmatmul.mubr.bf16.gmra.mrb[0].mxu0 %v721
        %v797 = vpop.f32.mrb[0].mxu0
        %v798 = vadd.f32 0.0, %v797
        %v799 = vpop.f32.mrb[0].mxu0
        %v800 = vpop.f32.mrb[0].mxu0
        %v801 = vadd.f32 0.0, %v800
        %v802 = vpop.f32.mrb[0].mxu0
        %803 = vmatprep.mubr.bf16.mxu0 0
        %804 = vmatmul.mubr.bf16.gmra.mrb[0].mxu0 %v724
        %v805 = vpop.f32.mrb[0].mxu0
        %v806 = vadd.f32 0.0, %v805
        %v807 = vpop.f32.mrb[0].mxu0
        %v808 = vpop.f32.mrb[0].mxu0
        %v809 = vadd.f32 0.0, %v808
        %v810 = vpop.f32.mrb[0].mxu0
        %811 = vmatprep.mubr.bf16.mxu0 0
        %812 = vmatmul.mubr.bf16.gmra.mrb[0].mxu0 %v727
        %v813 = vpop.f32.mrb[0].mxu0
        %v814 = vadd.f32 0.0, %v813
        %v815 = vpop.f32.mrb[0].mxu0
        %v816 = vpop.f32.mrb[0].mxu0
        %v817 = vadd.f32 0.0, %v816
        %v818 = vpop.f32.mrb[0].mxu0
        %819 = vmatprep.mubr.bf16.mxu0 0
        %820 = vmatmul.mubr.bf16.gmra.mrb[0].mxu0 %v730
        %v821 = vpop.f32.mrb[0].mxu0
        %v822 = vadd.f32 0.0, %v821
        %v823 = vpop.f32.mrb[0].mxu0
        %v824 = vpop.f32.mrb[0].mxu0
        %v825 = vadd.f32 0.0, %v824
        %v826 = vpop.f32.mrb[0].mxu0
        %827 = vmatprep.mubr.bf16.mxu0 0
        %828 = vmatmul.mubr.bf16.gmra.mrb[0].mxu0 %v733
        %v829 = vpop.f32.mrb[0].mxu0
        %v830 = vadd.f32 0.0, %v829
        %v831 = vpop.f32.mrb[0].mxu0
        %v832 = vpop.f32.mrb[0].mxu0
        %v833 = vadd.f32 0.0, %v832
        %v834 = vpop.f32.mrb[0].mxu0
        %835 = vdwg.mxu0
        %v836 = vld [vmem:[#allocation4] sm:$0x1]
        %v837 = vmax.f32 %v774, %v790
        %v838 = vmax.f32 %v777, %v793
        %v839 = vmax.f32 %v782, %v798
        %v840 = vmax.f32 %v785, %v801
        %v841 = vmax.f32 %v837, %v806
        %v842 = vmax.f32 %v838, %v809
        %v843 = vmax.f32 %v839, %v814
        %v844 = vmax.f32 %v840, %v817
        %v845 = vmax.f32 %v841, %v822
        %v846 = vmax.f32 %v842, %v825
        %v847 = vmax.f32 %v843, %v830
        %v848 = vmax.f32 %v844, %v833
        %v849 = vmax.f32 %v845, %v846
        %v850 = vmax.f32 %v847, %v848
        %v851 = vmax.f32 %v849, %v850
        %v852 = vrot.slane %v851, 4
        %v853 = vmax.f32 %v851, %v852
        %v854 = vrot.slane %v853, 2
        %v855 = vmax.f32 %v853, %v854
        %v856 = vrot.slane %v855, 1
        %v857 = vmax.f32 %v855, %v856
        %v858 = vmax.f32 %v836, %v857
        %v859 = vsub.f32 %v836, %v858
        %v860 = vmul.f32 %v859, 1.442695
        %v861 = vpow.pop %v860
        %v863 = vlaneseq
        %v864 = vshrl.u32 %v863, 7
        %v865 = vsub.s32 0, %v864
        %v866 = vrot.slane %v858, %v865
        %v868 = vsub.f32 %v774, %v866
        %v869 = vsub.f32 %v777, %v866
        %v870 = vsub.f32 %v782, %v866
        %v871 = vsub.f32 %v785, %v866
        %v872 = vsub.f32 %v790, %v866
        %v873 = vsub.f32 %v793, %v866
        %v874 = vsub.f32 %v798, %v866
        %v875 = vsub.f32 %v801, %v866
        %v876 = vsub.f32 %v806, %v866
        %v877 = vsub.f32 %v809, %v866
        %v878 = vsub.f32 %v814, %v866
        %v879 = vsub.f32 %v817, %v866
        %v880 = vsub.f32 %v822, %v866
        %v881 = vsub.f32 %v825, %v866
        %v882 = vsub.f32 %v830, %v866
        %v883 = vsub.f32 %v833, %v866
        %v884 = vmul.f32 %v868, 1.442695
        %v885 = vpow.pop %v884
        %v886 = vmul.f32 %v869, 1.442695
        %v887 = vpow.pop %v886
        %v888 = vmul.f32 %v870, 1.442695
        %v889 = vpow.pop %v888
        %v890 = vmul.f32 %v871, 1.442695
        %v891 = vpow.pop %v890
        %v892 = vmul.f32 %v872, 1.442695
        %v893 = vpow.pop %v892
        %v894 = vmul.f32 %v873, 1.442695
        %v895 = vpow.pop %v894
        %v896 = vmul.f32 %v874, 1.442695
        %v897 = vpow.pop %v896
        %v898 = vmul.f32 %v875, 1.442695
        %v899 = vpow.pop %v898
        %v900 = vmul.f32 %v876, 1.442695
        %v901 = vpow.pop %v900
        %v902 = vmul.f32 %v877, 1.442695
        %v903 = vpow.pop %v902
        %v904 = vmul.f32 %v878, 1.442695
        %v905 = vpow.pop %v904
        %v906 = vmul.f32 %v879, 1.442695
        %v907 = vpow.pop %v906
        %v908 = vmul.f32 %v880, 1.442695
        %v909 = vpow.pop %v908
        %v910 = vmul.f32 %v881, 1.442695
        %v911 = vpow.pop %v910
        %v912 = vmul.f32 %v882, 1.442695
        %v913 = vpow.pop %v912
        %v914 = vmul.f32 %v883, 1.442695
        %v915 = vpow.pop %v914
        %v916 = vld [vmem:[#allocation5] sm:$0x1]
        %v917 = vmul.f32 %v861, %v916
        %v918 = vadd.f32 %v885, %v887
        %v919 = vadd.f32 %v918, %v889
        %v920 = vadd.f32 %v919, %v891
        %v921 = vadd.f32 %v920, %v893
        %v922 = vadd.f32 %v921, %v895
        %v923 = vadd.f32 %v922, %v897
        %v924 = vadd.f32 %v923, %v899
        %v925 = vadd.f32 %v924, %v901
        %v926 = vadd.f32 %v925, %v903
        %v927 = vadd.f32 %v926, %v905
        %v928 = vadd.f32 %v927, %v907
        %v929 = vadd.f32 %v928, %v909
        %v930 = vadd.f32 %v929, %v911
        %v931 = vadd.f32 %v930, %v913
        %v932 = vadd.f32 %v931, %v915
        %v933 = vrot.slane %v932, 4
        %v934 = vadd.f32 %v932, %v933
        %v935 = vrot.slane %v934, 2
        %v936 = vadd.f32 %v934, %v935
        %v937 = vrot.slane %v936, 1
        %v938 = vadd.f32 %v936, %v937
        %v939 = vadd.f32 %v917, %v938
        %940 = vst [vmem:[#allocation5] sm:$0x1] %v939
        %v941 = vld [vmem:[#allocation3] sm:$0xf]
        %v943 = vlaneseq
        %v944 = vshrl.u32 %v943, 7
        %v945 = vsub.s32 0, %v944
        %v946 = vrot.slane %v861, %v945
        %v948 = vmul.f32 %v946, %v941
        %v949 = vpack.c.bf16 %v689, %v689
        %v950 = vpack.c.bf16 %v887, %v885
        %v951 = vpack.c.bf16 %v891, %v889
        %v952 = vpack.c.bf16 %v895, %v893
        %v953 = vpack.c.bf16 %v899, %v897
        %v954 = vpack.c.bf16 %v903, %v901
        %v955 = vpack.c.bf16 %v907, %v905
        %v956 = vpack.c.bf16 %v911, %v909
        %v957 = vpack.c.bf16 %v915, %v913
        %958 = vmatprep.subr.bf16.mxu0 0
        %959 = vmatpush1.bf16.msra.mxu0 %v950
        %960 = vmatprep.subr.bf16.mxu0 0
        %961 = vmatpush1.bf16.msra.mxu0 %v951
        %962 = vmatprep.subr.bf16.mxu0 0
        %963 = vmatpush1.bf16.msra.mxu0 %v952
        %964 = vmatprep.subr.bf16.mxu0 0
        %965 = vmatpush1.bf16.msra.mxu0 %v953
        %966 = vmatprep.subr.bf16.mxu0 0
        %967 = vmatpush1.bf16.msra.mxu0 %v954
        %968 = vmatprep.subr.bf16.mxu0 0
        %969 = vmatpush1.bf16.msra.mxu0 %v955
        %970 = vmatprep.subr.bf16.mxu0 0
        %971 = vmatpush1.bf16.msra.mxu0 %v956
        %972 = vmatprep.subr.bf16.mxu0 0
        %973 = vmatpush1.bf16.msra.mxu0 %v957
        %974 = vmatprep.subr.bf16.mxu0 0
        %975 = vmatpush1.bf16.msra.mxu0 0
        %976 = vmatprep.subr.bf16.mxu0 0
        %977 = vmatpush1.bf16.msra.mxu0 0
        %978 = vmatprep.subr.bf16.mxu0 0
        %979 = vmatpush1.bf16.msra.mxu0 0
        %980 = vmatprep.subr.bf16.mxu0 0
        %981 = vmatpush1.bf16.msra.mxu0 0
        %982 = vmatprep.subr.bf16.mxu0 0
        %983 = vmatpush1.bf16.msra.mxu0 0
        %984 = vmatprep.subr.bf16.mxu0 0
        %985 = vmatpush1.bf16.msra.mxu0 0
        %986 = vmatprep.subr.bf16.mxu0 0
        %987 = vmatpush1.bf16.msra.mxu0 0
        %988 = vmatprep.subr.bf16.mxu0 0
        %989 = vmatpush1.bf16.msra.mxu0 0
        %990 = vmatprep.mubr.bf16.mxu0 0
        %991 = vmatmul.mubr.bf16.gmra.mrb[0].mxu0 %v949
        %v992 = vpop.f32.mrb[0].mxu0
        %v993 = vadd.f32 0.0, %v992
        %v994 = vpop.f32.mrb[0].mxu0
        %v995 = vpop.f32.mrb[0].mxu0
        %v996 = vpop.f32.mrb[0].mxu0
        %997 = vdwg.mxu0
        %v998 = vadd.f32 %v948, %v993
        %999 = vst [vmem:[#allocation3] sm:$0xf] %v998
        %1000 = vst [vmem:[#allocation4] sm:$0x1] %v858
        %p1001 = scmp.eq.s32.totalorder %s34, 1
        // Predicated region
        $region69: #{tpu_custom_call.1} parent=59 // pred_check
          %p1002 = pneg %p1001
        $region70: #{tpu_custom_call.1} parent=59 // pred_check_branch
          %1004 = sbr.rel (%p1002) target = $region72
        $region71: #{tpu_custom_call.1} parent=59 // pred_region
          %v1005 = vld [vmem:[#allocation5] sm:$0x1]
          %v1006 = vrcp.pop %v1005
          %v1007 = vld [vmem:[#allocation3] sm:$0xf]
          %v1009 = vlaneseq
          %v1010 = vshrl.u32 %v1009, 7
          %v1011 = vsub.s32 0, %v1010
          %v1012 = vrot.slane %v1006, %v1011
          %v1014 = vmul.f32 %v1007, %v1012
          %v1015 = vld [vmem:[%s5] sm:$0xf]
          %v1016 = vld [vmem:[%s9] sm:$0xf]
          %1018 = vset.pattern.permute.xlu0 0
          %1019 = vperm.xlu0 %1018, %v1016
          %v1020 = vpop.permute.xlu0 %1019
          %v1023 = vsel %vm534, %v1015, 0
          %v1026 = vsel %vm538, %v1014, 0
          %1028 = vmatprep.subr.mxu0 0.0
          %1029 = vmatpush1.msra.mxu0 %v1026
          %1030 = vmatprep.subr.mxu0 0.0
          %1031 = vmatpush1.msra.mxu0 0.0
          %1032 = vmatprep.subr.mxu0 0.0
          %1033 = vmatpush1.msra.mxu0 0.0
          %1034 = vmatprep.subr.mxu0 0.0
          %1035 = vmatpush1.msra.mxu0 0.0
          %1036 = vmatprep.subr.mxu0 0.0
          %1037 = vmatpush1.msra.mxu0 0.0
          %1038 = vmatprep.subr.mxu0 0.0
          %1039 = vmatpush1.msra.mxu0 0.0
          %1040 = vmatprep.subr.mxu0 0.0
          %1041 = vmatpush1.msra.mxu0 0.0
          %1042 = vmatprep.subr.mxu0 0.0
          %1043 = vmatpush1.msra.mxu0 0.0
          %1044 = vmatprep.subr.mxu0 0.0
          %1045 = vmatpush1.msra.mxu0 0.0
          %1046 = vmatprep.subr.mxu0 0.0
          %1047 = vmatpush1.msra.mxu0 0.0
          %1048 = vmatprep.subr.mxu0 0.0
          %1049 = vmatpush1.msra.mxu0 0.0
          %1050 = vmatprep.subr.mxu0 0.0
          %1051 = vmatpush1.msra.mxu0 0.0
          %1052 = vmatprep.subr.mxu0 0.0
          %1053 = vmatpush1.msra.mxu0 0.0
          %1054 = vmatprep.subr.mxu0 0.0
          %1055 = vmatpush1.msra.mxu0 0.0
          %1056 = vmatprep.subr.mxu0 0.0
          %1057 = vmatpush1.msra.mxu0 0.0
          %1058 = vmatprep.subr.mxu0 0.0
          %1059 = vmatpush1.msra.mxu0 0.0
          %1060 = vmatprep.subr.mxu0 0.0
          %1061 = vmatpush1.msra.mxu0 0.0
          %1062 = vmatprep.subr.mxu0 0.0
          %1063 = vmatpush1.msra.mxu0 0.0
          %1064 = vmatprep.subr.mxu0 0.0
          %1065 = vmatpush1.msra.mxu0 0.0
          %1066 = vmatprep.subr.mxu0 0.0
          %1067 = vmatpush1.msra.mxu0 0.0
          %1068 = vmatprep.subr.mxu0 0.0
          %1069 = vmatpush1.msra.mxu0 0.0
          %1070 = vmatprep.subr.mxu0 0.0
          %1071 = vmatpush1.msra.mxu0 0.0
          %1072 = vmatprep.subr.mxu0 0.0
          %1073 = vmatpush1.msra.mxu0 0.0
          %1074 = vmatprep.subr.mxu0 0.0
          %1075 = vmatpush1.msra.mxu0 0.0
          %1076 = vmatprep.subr.mxu0 0.0
          %1077 = vmatpush1.msra.mxu0 0.0
          %1078 = vmatprep.subr.mxu0 0.0
          %1079 = vmatpush1.msra.mxu0 0.0
          %1080 = vmatprep.subr.mxu0 0.0
          %1081 = vmatpush1.msra.mxu0 0.0
          %1082 = vmatprep.subr.mxu0 0.0
          %1083 = vmatpush1.msra.mxu0 0.0
          %1084 = vmatprep.subr.mxu0 0.0
          %1085 = vmatpush1.msra.mxu0 0.0
          %1086 = vmatprep.subr.mxu0 0.0
          %1087 = vmatpush1.msra.mxu0 0.0
          %1088 = vmatprep.subr.mxu0 0.0
          %1089 = vmatpush1.msra.mxu0 0.0
          %1090 = vmatprep.subr.mxu0 0.0
          %1091 = vmatpush1.msra.mxu0 0.0
          %1092 = vmatprep.mubr.f32.mxu0 0.0
          %1093 = vmatmul.mubr.f32.gmra.mrb[0].mxu0 %v1023
          %v1094 = vpop.f32.mrb[0].mxu0
          %v1095 = vadd.f32 %v1020, %v1094
          %v1096 = vpop.f32.mrb[0].mxu0
          %1097 = vdwg.mxu0
          %1098 = vst [vmem:[%s422] sm:$0xf] %v1095
        $region72: #{tpu_custom_call.1} parent=59 // pred_fallthru
          _
        %s1099 = sand.u32 %s280, 1
        %s1100 = scalar_lea.sflag [#allocation8], %s1099
        %s1101 = sand.u32 %s280, 1
        %s1102 = smul.addr %s1101, 4
        %s1103 = scalar_lea.vmem [#allocation9], %s1102
        // Predicated region
        $region73: #{tpu_custom_call.1} parent=59 // pred_check
          %p1104 = pneg %p290
        $region74: #{tpu_custom_call.1} parent=59 // pred_check_branch
          %1106 = sbr.rel (%p1104) target = $region76
        $region75: #{tpu_custom_call.1} parent=59 // pred_region
          %s1108 = ssub.s32 64, 64
          %1109 = vsyncadd %s1100, %s1108
          %s1110 = smul.addr %s32, 2
          %s1111 = sadd.s32 %s33, %s1110
          %s1112 = smul.addr %s1111, 64
          %s1113 = scalar_lea.hbm %s10, %s1112
          %s1115 = sshll.u32 %s1103, 4
          %s1116 = int_to_ptr.vmem [resolvable:$true] %s1115
          %1118 = dma.vmem_to_hbm [thread:$0]  %s1116, 64, %s1113, %s1100
        $region76: #{tpu_custom_call.1} parent=59 // pred_fallthru
          _
      $region60: #{tpu_custom_call.1} parent=5 // pred_fallthru
        _
      %p1119 = scmp.le.s32.totalorder 2, %s22
      // Predicated region
      $region77: #{tpu_custom_call.1} parent=5 // pred_check
        %p1120 = pneg %p1119
      $region78: #{tpu_custom_call.1} parent=5 // pred_check_branch
        %1122 = sbr.rel (%p1120) target = $region80
      $region79: #{tpu_custom_call.1} parent=5 // pred_region
        %s1123 = ssub.s32 %s22, 2
        // Predicated region
        $region81: #{tpu_custom_call.1} parent=79 // pred_check
          %p1124 = pneg %p296
        $region82: #{tpu_custom_call.1} parent=79 // pred_check_branch
          %1126 = sbr.rel (%p1124) target = $region84
        $region83: #{tpu_custom_call.1} parent=79 // pred_region
          %s1127 = sand.u32 %s281, 1
          %s1128 = scalar_lea.sflag [#allocation8], %s1127
          %s1129 = sand.u32 %s281, 1
          %s1130 = smul.addr %s1129, 4
          %s1131 = scalar_lea.vmem [#allocation9], %s1130
          %1132 = dma.done %s1128, 64
        $region84: #{tpu_custom_call.1} parent=79 // pred_fallthru
          _
      $region80: #{tpu_custom_call.1} parent=5 // pred_fallthru
        _
    $region6: #{tpu_custom_call.1} parent=1 // loop_footer
      %s26 = sadd.s32 1, %s22
    $region7: #{tpu_custom_call.1} parent=1 // loop_footer_branch
      %21 = sbr.rel target = $region3
    $region8: #{tpu_custom_call.1} parent=1 // loop_exit
      _
    %1133 = vsyncpa [#allocation7], 1
    %s1134 = scalar_lea.sflag [#allocation7], 1
    %1135 = vsyncpa %s1134, 1
    %1136 = vsyncpa [#allocation8], 1
    %s1137 = scalar_lea.sflag [#allocation8], 1
    %1138 = vsyncpa %s1137, 1

</llo_original>
